<compile_context>
chip_gen: v5e
topology: v5e:2x2
jax: 0.10.0
libtpu: 0.0.40
codegen_flags: <defaults>
</compile_context>

<pallas_src>
import jax
import jax.numpy as jnp
from jax.experimental import pallas as pl
from jax.experimental.pallas import tpu as pltpu


def predictor_kernel(x_ref, w1_ref, b1_ref, w2aug_ref, b2_ref, o_ref):
    # x:     (TB, D)  input dtype (f32/bf16)  batch tile (tail block may hold garbage rows)
    # w1:    (D, D)   bf16   resident
    # b1:    (1, D)   f32    resident
    # w2aug: (2, D)   f32    row 0 = w2, row 1 = ones (resident)
    # b2:    (1, 1)   f32    SMEM scalar
    # o:     (1, TB)  f32    lane-dense output slab

    # Cast to bf16 in-kernel (free VPU op under the memory bound), MXU matmul
    # with f32 accumulation.
    x = x_ref[...].astype(jnp.bfloat16)
    h = jnp.dot(x, w1_ref[...], preferred_element_type=jnp.float32)
    h = h + b1_ref[...]

    # Numerically-stable softmax numerator (f32, exp on the EUP).
    m = jnp.max(h, axis=-1, keepdims=True)
    e = jnp.exp(h - m)

    # Fold Linear 2 + softmax normalization:
    #   r[0, j] = sum_d e[j, d] * w2[d]   (unnormalized linear_2)
    #   r[1, j] = sum_d e[j, d]           (softmax denominator)
    # Single NT matmul -> result is already lane-dense (2, TB).
    r = jax.lax.dot_general(
        w2aug_ref[...], e,
        dimension_numbers=(((1,), (1,)), ((), ())),
        preferred_element_type=jnp.float32,
    )
    num = r[0:1, :]
    den = r[1:2, :]

    # y = (e @ w2) / sum(e) + b2 ; approx reciprocal runs on the (idle) EUP.
    y = num * pl.reciprocal(den, approx=True) + b2_ref[0, 0]

    # Sigmoid: exp + divide (EUP-side), stays f32.
    o_ref[...] = 1.0 / (1.0 + jnp.exp(-y))


def predictor_forward(encoded_x, w1, b1, w2, b2, *, tb=1024):
    """Fused Linear -> Softmax(dim=1) -> Linear -> Sigmoid.

    encoded_x: (B, D) with D = 2 * hidden_dims (f32 or bf16; streamed as-is)
    w1: (D, D) stored as (in, out) so the kernel computes x @ w1
        (NOTE: PyTorch nn.Linear stores weights as (out, in) -> transpose when
        loading checkpoint weights.)
    b1: (D,), w2: (D,), b2: scalar
    Returns (B,) float32, matching `Predictor.forward(...).squeeze()`.
    """
    B, D = encoded_x.shape
    assert w1.shape == (D, D)

    # --- batch tile selection -------------------------------------------------
    if B <= tb:
        # Single block covering the whole batch (exact fit, any B).
        tb_eff = B
    else:
        # Multiple of 128 so the MXU M dim and the (1, tb) output stores are
        # well fed / unmasked; shrink only to keep >= ~8 grid steps so the
        # "parallel" axis can feed both v7x TensorCores.
        tb_eff = max(512, (tb // 128) * 128)
        while tb_eff > 512 and pl.cdiv(B, tb_eff) < 8:
            tb_eff //= 2
    n_blocks = pl.cdiv(B, tb_eff)
    b_pad = n_blocks * tb_eff  # output slab width (tail sliced off below)

    # --- small resident operands (one-time tiny casts; not on the hot stream) -
    w1_bf = w1.astype(jnp.bfloat16)
    b1_2d = jnp.asarray(b1, jnp.float32).reshape(1, D)
    w2aug = jnp.stack(
        [jnp.asarray(w2, jnp.float32).reshape(D), jnp.ones((D,), jnp.float32)],
        axis=0)                                          # (2, D): [w2; ones]
    b2_sc = jnp.asarray(b2, jnp.float32).reshape(1, 1)

    # --- VMEM footprint estimate; raise the scoped limit only if needed -------
    x_bytes = jnp.dtype(encoded_x.dtype).itemsize
    est = int(2 * tb_eff * D * x_bytes        # x tile, double-buffered
              + 10 * tb_eff * D               # bf16 x copy + h + e (f32)
              + 2 * D * D + 12 * D            # w1 (bf16), b1, w2aug
              + 40 * tb_eff                   # fold result + output buffers
              + (2 << 20))                    # headroom
    params = dict(dimension_semantics=("parallel",))
    if est > (16 << 20):                      # v5e scoped default
        params["vmem_limit_bytes"] = min(est, 48 << 20)  # stay under v7x 64 MiB
    compiler_params = pltpu.CompilerParams(**params)

    out = pl.pallas_call(
        predictor_kernel,
        out_shape=jax.ShapeDtypeStruct((1, b_pad), jnp.float32),
        grid=(n_blocks,),
        in_specs=[
            pl.BlockSpec((tb_eff, D), lambda i: (i, 0)),        # x: batch-tiled
            pl.BlockSpec((D, D), lambda i: (0, 0)),             # w1: VMEM-resident
            pl.BlockSpec((1, D), lambda i: (0, 0)),             # b1: VMEM-resident
            pl.BlockSpec((2, D), lambda i: (0, 0)),             # [w2; ones]: resident
            pl.BlockSpec(memory_space=pltpu.MemorySpace.SMEM),  # b2 scalar in SMEM
        ],
        out_specs=pl.BlockSpec((1, tb_eff), lambda i: (0, i)),  # lane-dense slab
        compiler_params=compiler_params,
    )(encoded_x, w1_bf, b1_2d, w2aug, b2_sc)

    # PyTorch's .squeeze() -> (B,); drops any garbage tail-block columns.
    return out[0, :B]


if __name__ == "__main__":
    hidden_dims = 32          # -> feature dim D = 64
    batch = 8

    key = jax.random.PRNGKey(0)
    k1, k2, kx = jax.random.split(key, 3)

    D = hidden_dims * 2
    # Matches Predictor.init_weights(): weights ~ U(-0.1, 0.1), biases = 0.
    # (PyTorch stores weights as (out, in); we keep the x @ W convention.)
    w1 = jax.random.uniform(k1, (D, D), jnp.float32, minval=-0.1, maxval=0.1)
    b1 = jnp.zeros((D,), jnp.float32)
    w2 = jax.random.uniform(k2, (D,), jnp.float32, minval=-0.1, maxval=0.1)
    b2 = jnp.zeros((), jnp.float32)

    encoded_x = jax.random.normal(kx, (batch, D), jnp.float32)

    out = predictor_forward(encoded_x, w1, b1, w2, b2)
    out = jax.block_until_ready(out)

    # Pure-JAX f32 reference of the same math (tolerance loosened for the
    # in-kernel bf16 matmul path + approx reciprocal).
    h_ref = encoded_x @ w1 + b1
    p_ref = jax.nn.softmax(h_ref, axis=1)
    y_ref = jax.nn.sigmoid(p_ref @ w2 + b2)
    assert out.shape == (batch,)
    assert jnp.allclose(out, y_ref, atol=3e-3, rtol=0.0), (
        float(jnp.max(jnp.abs(out - y_ref))))

    print("KERNEL_OK")
</pallas_src>

<mosaic_0001>
module attributes {stable_mosaic.version = 11 : i64} {
  func.func @predictor_kernel(%arg0: i32, %arg1: memref<8x64xf32, #tpu.memory_space<vmem>>, %arg2: memref<64x64xbf16, #tpu.memory_space<vmem>>, %arg3: memref<1x64xf32, #tpu.memory_space<vmem>>, %arg4: memref<2x64xf32, #tpu.memory_space<vmem>>, %arg5: memref<1x1xf32, #tpu.memory_space<smem>>, %arg6: memref<1x8xf32, #tpu.memory_space<vmem>>) attributes {dimension_semantics = [#tpu.dimension_semantics<parallel>], iteration_bounds = array<i64: 1>, scalar_prefetch = 0 : i64, scratch_operands = 0 : i64, tpu.core_type = #tpu.core_type<tc>, window_params = [{transform_indices = @transform_0, window_bounds = array<i64: 8, 64>}, {pipeline_mode = #tpu.pipeline_mode<synchronous>, transform_indices = @transform_1, window_bounds = array<i64: 64, 64>}, {pipeline_mode = #tpu.pipeline_mode<synchronous>, transform_indices = @transform_2, window_bounds = array<i64: 1, 64>}, {pipeline_mode = #tpu.pipeline_mode<synchronous>, transform_indices = @transform_3, window_bounds = array<i64: 2, 64>}, {transform_indices = @transform_4, window_bounds = array<i64: 1, 1>}, {transform_indices = @transform_5, window_bounds = array<i64: 1, 8>}]} {
    %c0 = arith.constant 0 : index
    %c0_0 = arith.constant 0 : index
    %0 = vector.load %arg1[%c0, %c0_0] : memref<8x64xf32, #tpu.memory_space<vmem>>, vector<8x64xf32>
    %1 = arith.truncf %0 : vector<8x64xf32> to vector<8x64xbf16>
    %c0_1 = arith.constant 0 : index
    %c0_2 = arith.constant 0 : index
    %2 = vector.load %arg2[%c0_1, %c0_2] : memref<64x64xbf16, #tpu.memory_space<vmem>>, vector<64x64xbf16>
    %cst = arith.constant dense<0.000000e+00> : vector<8x64xf32>
    %3 = tpu.matmul %1, %2, %cst {dimension_numbers = #tpu.dot_dimension_numbers<[1], [0], [0], [1], [0, 0, 1, 1], [], []>} : vector<8x64xbf16>, vector<64x64xbf16>, vector<8x64xf32> -> vector<8x64xf32>
    %c0_3 = arith.constant 0 : index
    %c0_4 = arith.constant 0 : index
    %4 = vector.load %arg3[%c0_3, %c0_4] : memref<1x64xf32, #tpu.memory_space<vmem>>, vector<1x64xf32>
    %5 = vector.broadcast %4 : vector<1x64xf32> to vector<8x64xf32>
    %6 = arith.addf %3, %5 : vector<8x64xf32>
    %cst_5 = arith.constant dense<0xFF800000> : vector<8xf32>
    %7 = vector.multi_reduction <maximumf>, %6, %cst_5 [1] : vector<8x64xf32> to vector<8xf32>
    %8 = vector.shape_cast %7 : vector<8xf32> to vector<8x1xf32>
    %9 = vector.broadcast %8 : vector<8x1xf32> to vector<8x64xf32>
    %10 = arith.subf %6, %9 : vector<8x64xf32>
    %11 = math.exp %10 : vector<8x64xf32>
    %c0_6 = arith.constant 0 : index
    %c0_7 = arith.constant 0 : index
    %12 = vector.load %arg4[%c0_6, %c0_7] : memref<2x64xf32, #tpu.memory_space<vmem>>, vector<2x64xf32>
    %cst_8 = arith.constant dense<0.000000e+00> : vector<2x8xf32>
    %13 = tpu.matmul %12, %11, %cst_8 {dimension_numbers = #tpu.dot_dimension_numbers<[1], [1], [0], [0], [0, 0, 1, 0], [], []>} : vector<2x64xf32>, vector<8x64xf32>, vector<2x8xf32> -> vector<2x8xf32>
    %14 = vector.extract_strided_slice %13 {offsets = [0, 0], sizes = [1, 8], strides = [1, 1]} : vector<2x8xf32> to vector<1x8xf32>
    %15 = vector.extract_strided_slice %13 {offsets = [1, 0], sizes = [1, 8], strides = [1, 1]} : vector<2x8xf32> to vector<1x8xf32>
    %16 = tpu.reciprocal %15 {approx = true} : vector<1x8xf32> -> vector<1x8xf32>
    %17 = arith.mulf %14, %16 : vector<1x8xf32>
    %c0_9 = arith.constant 0 : index
    %c0_10 = arith.constant 0 : index
    %18 = memref.load %arg5[%c0_9, %c0_10] : memref<1x1xf32, #tpu.memory_space<smem>>
    %19 = vector.broadcast %18 : f32 to vector<1x8xf32>
    %20 = arith.addf %17, %19 : vector<1x8xf32>
    %cst_11 = arith.constant 0.000000e+00 : f32
    %21 = vector.broadcast %cst_11 : f32 to vector<1x8xf32>
    %22 = arith.subf %21, %20 : vector<1x8xf32>
    %23 = math.exp %22 : vector<1x8xf32>
    %cst_12 = arith.constant 1.000000e+00 : f32
    %24 = vector.broadcast %cst_12 : f32 to vector<1x8xf32>
    %25 = arith.addf %24, %23 : vector<1x8xf32>
    %cst_13 = arith.constant 1.000000e+00 : f32
    %26 = vector.broadcast %cst_13 : f32 to vector<1x8xf32>
    %27 = arith.divf %26, %25 : vector<1x8xf32>
    %c0_14 = arith.constant 0 : index
    %c0_15 = arith.constant 0 : index
    %28 = vector.load %arg6[%c0_14, %c0_15] : memref<1x8xf32, #tpu.memory_space<vmem>>, vector<1x8xf32>
    tpu.vector_store %arg6[%c0_14, %c0_15], %27 {strides = array<i32>} : memref<1x8xf32, #tpu.memory_space<vmem>>, vector<1x8xf32>,
    return
  }
  func.func @transform_0(%arg0: i32) -> (i32, i32) {
    %c0_i32 = arith.constant 0 : i32
    %c0_i32_0 = arith.constant 0 : i32
    return %arg0, %c0_i32 : i32, i32
  }
  func.func @transform_1(%arg0: i32) -> (i32, i32) {
    %c0_i32 = arith.constant 0 : i32
    %c0_i32_0 = arith.constant 0 : i32
    %c0_i32_1 = arith.constant 0 : i32
    return %c0_i32, %c0_i32_0 : i32, i32
  }
  func.func @transform_2(%arg0: i32) -> (i32, i32) {
    %c0_i32 = arith.constant 0 : i32
    %c0_i32_0 = arith.constant 0 : i32
    %c0_i32_1 = arith.constant 0 : i32
    return %c0_i32, %c0_i32_0 : i32, i32
  }
  func.func @transform_3(%arg0: i32) -> (i32, i32) {
    %c0_i32 = arith.constant 0 : i32
    %c0_i32_0 = arith.constant 0 : i32
    %c0_i32_1 = arith.constant 0 : i32
    return %c0_i32, %c0_i32_0 : i32, i32
  }
  func.func @transform_4(%arg0: i32) -> (i32, i32) {
    %c0_i32 = arith.constant 0 : i32
    %c0_i32_0 = arith.constant 0 : i32
    %c0_i32_1 = arith.constant 0 : i32
    return %c0_i32, %c0_i32_0 : i32, i32
  }
  func.func @transform_5(%arg0: i32) -> (i32, i32) {
    %c0_i32 = arith.constant 0 : i32
    %c0_i32_0 = arith.constant 0 : i32
    return %c0_i32, %arg0 : i32, i32
  }
}

</mosaic_0001>

<llo_original>
// kernel: tpu_custom_call.1
$region0: #{tpu_custom_call.1}
  #allocation0 [shape = 'u32[]', space=smem, size = 0x4, offset = 0x4, fixed_abs, tag = 'smem constant byte address 0x4 - core index']
  #allocation1 [shape = 'u32[72,128]{1,0:T(1,128)}', space=vmem, size = 0x9000, scoped, tag = 'internal scratch']
  #allocation2 [shape = 'f32[1,1]{1,0:T(1,128)S(6)}', space=smem, size = 0x200, scoped, tag = 'scoped memory for tpu_custom_call.1']
  %s0 = inlined_call_operand.hbm [shape: f32[8,64], index: 0, kind: input, shape index: {}]
  %s1 = inlined_call_operand.hbm [shape: bf16[64,64], index: 1, kind: input, shape index: {}]
  %s2 = inlined_call_operand.vmem [shape: f32[1,64], index: 2, kind: input, shape index: {}]
  %s3 = inlined_call_operand.vmem [shape: f32[2,64], index: 3, kind: input, shape index: {}]
  %s4 = inlined_call_operand.<no memory space> [shape: f32[1,1], index: 4, kind: input, shape index: {}]
  %s5 = inlined_call_operand.hbm [shape: f32[1,8], index: 5, kind: output, shape index: {}]
  %s6 = sld [smem:[#allocation0]]
  $region38: #{tpu_custom_call.1} parent=0
    _
  %s8 = ssub.s32 1, %s6
  %s9 = scalar_select 0, %s8, %s6
  %10 = sst [smem:[#allocation2]] %s4
  $region1: #{tpu_custom_call.1} parent=0
    #allocation3 [shape = 'u8[4096]{0}', space=vmem, size = 0x1000, scoped, tag = 'input window, operand 0, single buffered']
    #allocation4 [shape = 's32[1]{0}', space=sflag, size = 0x4, scoped, tag = 'scoped memory for tpu_custom_call.1']
    #allocation5 [shape = 's32[1]{0}', space=sflag, size = 0x4, scoped, tag = 'scoped memory for tpu_custom_call.1']
    #allocation6 [shape = 'u8[16384]{0}', space=vmem, size = 0x4000, scoped, tag = 'input window, operand 1, single buffered']
    #allocation7 [shape = 's32[1]{0}', space=sflag, size = 0x4, scoped, tag = 'scoped memory for tpu_custom_call.1']
    #allocation8 [shape = 'u8[512]{0}', space=vmem, size = 0x400, scoped, tag = 'output window, operand 0, single buffered']
    %11 = vsyncpa [#allocation4], 0
    %12 = vsyncpa [#allocation7], 0
    %13 = vsyncpa [#allocation5], 0
    // Predicated region
    $region2: #{tpu_custom_call.1} parent=1 // pred_check
      _
    $region3: #{tpu_custom_call.1} parent=1 // pred_check_branch
      %15 = sbr.rel (0) target = $region5
    $region4: #{tpu_custom_call.1} parent=1 // pred_region
      %17 = vsyncadd [#allocation4], 0
      %s19 = sshll.u32 %s0, 4
      %s20 = int_to_ptr.hbm [resolvable:$true] %s19
      %s21 = sshll.u32 [#allocation3], 4
      %s22 = int_to_ptr.vmem [resolvable:$true] %s21
      %24 = dma.hbm_to_vmem [thread:$0]  %s20, 128, %s22, [#allocation4]
    $region5: #{tpu_custom_call.1} parent=1 // pred_fallthru
      _
    // Predicated region
    $region6: #{tpu_custom_call.1} parent=1 // pred_check
      _
    $region7: #{tpu_custom_call.1} parent=1 // pred_check_branch
      %26 = sbr.rel (0) target = $region9
    $region8: #{tpu_custom_call.1} parent=1 // pred_region
      %28 = vsyncadd [#allocation7], 0
      %s29 = sshll.u32 %s1, 4
      %s30 = int_to_ptr.hbm [resolvable:$true] %s29
      %s31 = sshll.u32 [#allocation6], 4
      %s32 = int_to_ptr.vmem [resolvable:$true] %s31
      %37 = dma.hbm_to_vmem [thread:$0]  %s30, 512, %s32, [#allocation7], 64, 64, 4
    $region9: #{tpu_custom_call.1} parent=1 // pred_fallthru
      _
    // Predicated region
    $region10: #{tpu_custom_call.1} parent=1 // pred_check
      _
    $region11: #{tpu_custom_call.1} parent=1 // pred_check_branch
      %39 = sbr.rel (0) target = $region13
    $region12: #{tpu_custom_call.1} parent=1 // pred_region
      _
    $region13: #{tpu_custom_call.1} parent=1 // pred_fallthru
      _
    // Predicated region
    $region14: #{tpu_custom_call.1} parent=1 // pred_check
      _
    $region15: #{tpu_custom_call.1} parent=1 // pred_check_branch
      %41 = sbr.rel (0) target = $region17
    $region16: #{tpu_custom_call.1} parent=1 // pred_region
      _
    $region17: #{tpu_custom_call.1} parent=1 // pred_fallthru
      _
    // Predicated region
    $region18: #{tpu_custom_call.1} parent=1 // pred_check
      _
    $region19: #{tpu_custom_call.1} parent=1 // pred_check_branch
      %43 = sbr.rel (0) target = $region21
    $region20: #{tpu_custom_call.1} parent=1 // pred_region
      _
    $region21: #{tpu_custom_call.1} parent=1 // pred_fallthru
      _
    // Predicated region
    $region22: #{tpu_custom_call.1} parent=1 // pred_check
      _
    $region23: #{tpu_custom_call.1} parent=1 // pred_check_branch
      %45 = sbr.rel (0) target = $region25
    $region24: #{tpu_custom_call.1} parent=1 // pred_region
      %47 = dma.done [#allocation4], 128
    $region25: #{tpu_custom_call.1} parent=1 // pred_fallthru
      _
    // Predicated region
    $region26: #{tpu_custom_call.1} parent=1 // pred_check
      _
    $region27: #{tpu_custom_call.1} parent=1 // pred_check_branch
      %49 = sbr.rel (0) target = $region29
    $region28: #{tpu_custom_call.1} parent=1 // pred_region
      %51 = dma.done [#allocation7], 512
    $region29: #{tpu_custom_call.1} parent=1 // pred_fallthru
      _
    %v53 = vld [vmem:[#allocation3] sm:$0xff]
    %v54 = vpack.c.bf16 %v53, %v53
    %v55 = vld [vmem:[#allocation6] sm:$0xf]
    %v56 = vld [vmem:[#allocation6 + $0x4] sm:$0xf]
    %v57 = vld [vmem:[#allocation6 + $0x8] sm:$0xf]
    %v58 = vld [vmem:[#allocation6 + $0xc] sm:$0xf]
    %v59 = vld [vmem:[#allocation6 + $0x10] sm:$0xf]
    %v60 = vld [vmem:[#allocation6 + $0x14] sm:$0xf]
    %v61 = vld [vmem:[#allocation6 + $0x18] sm:$0xf]
    %v62 = vld [vmem:[#allocation6 + $0x1c] sm:$0xf]
    %v63 = vld [vmem:[%s2] sm:$0x1]
    %v65 = vperm.slane %v63, 0
    %v75 = vunpack.c.l.b16 %v55
    %v76 = vunpack.c.l.b16 %v56
    %v77 = vunpack.c.l.b16 %v57
    %v78 = vunpack.c.l.b16 %v58
    %v79 = vunpack.c.l.b16 %v59
    %v80 = vunpack.c.l.b16 %v60
    %v81 = vunpack.c.l.b16 %v61
    %v82 = vunpack.c.l.b16 %v62
    %v83 = vpack.c.b16 %v76, %v75
    %v84 = vpack.c.b16 %v78, %v77
    %v85 = vpack.c.b16 %v80, %v79
    %v86 = vpack.c.b16 %v82, %v81
    %vm91 = vcmask 523264
    %v93 = vsel %vm91, %v54, 0
    %95 = vmatpush.bf16.msra.mxu0 0
    %96 = vmatpush.bf16.msra.mxu0 0
    %97 = vmatpush.bf16.msra.mxu0 0
    %98 = vmatpush.bf16.msra.mxu0 0
    %99 = vmatpush.bf16.msra.mxu0 %v86
    %100 = vmatpush.bf16.msra.mxu0 %v85
    %101 = vmatpush.bf16.msra.mxu0 %v84
    %102 = vmatpush.bf16.msra.mxu0 %v83
    %103 = vmatmul.bf16.gmra.mxu0 %v93
    %v104 = vpop.f32.mrf.mxu0
    %v105 = vadd.f32 %v65, %v104
    %v106 = vpop.f32.mrf.mxu0
    %107 = vdwg.mxu0
    %v108 = vsel %vm91, %v105, -inf
    %109 = vmax.xlane.f32.xlu0 %v108
    %v110 = vpop.xlane.xlu0 %109
    %v111 = vsub.f32 %v105, %v110
    %v112 = vmul.f32 %v111, 1.442695
    %v113 = vpow.pop %v112
    %v114 = vld [vmem:[%s3] sm:$0x3]
    %v116 = vsel %vm91, %v114, 0
    %v119 = vsel %vm91, %v113, 0
    %121 = vmatpush.xpose.msra.mxu0 0.0
    %122 = vmatpush.xpose.msra.mxu0 0.0
    %123 = vmatpush.xpose.msra.mxu0 0.0
    %124 = vmatpush.xpose.msra.mxu0 0.0
    %125 = vmatpush.xpose.msra.mxu0 0.0
    %126 = vmatpush.xpose.msra.mxu0 0.0
    %127 = vmatpush.xpose.msra.mxu0 0.0
    %128 = vmatpush.xpose.msra.mxu0 0.0
    %129 = vmatpush.xpose.msra.mxu0 0.0
    %130 = vmatpush.xpose.msra.mxu0 0.0
    %131 = vmatpush.xpose.msra.mxu0 0.0
    %132 = vmatpush.xpose.msra.mxu0 0.0
    %133 = vmatpush.xpose.msra.mxu0 0.0
    %134 = vmatpush.xpose.msra.mxu0 0.0
    %135 = vmatpush.xpose.msra.mxu0 0.0
    %136 = vmatpush.xpose.msra.mxu0 %v119
    %137 = vmatmul.f32.gmra.mxu0 %v116
    %v138 = vpop.f32.mrf.mxu0
    %v139 = vadd.f32 0.0, %v138
    %140 = vdwg.mxu0
    %v141 = vrcp.pop %v139
    %v143 = vrot.slane %v141, 1
    %v145 = vmul.f32 %v139, %v143
    %s146 = sld [smem:[#allocation2]]
    %v147 = vstv %s146
    %v148 = vadd.f32 %v145, %v147
    %v149 = vsub.f32 0.0, %v148
    %v150 = vmul.f32 %v149, 1.442695
    %v151 = vpow.pop %v150
    %v152 = vadd.f32 %v151, 1.0
    %v153 = vrcp.pop %v152
    %v154 = vmul.f32 %v152, %v153
    %v155 = vsub.f32 1.0, %v154
    %v156 = vmul.f32 %v153, %v155
    %v157 = vadd.f32 %v153, %v156
    %vm158 = vweird.f32 %v152
    %vm159 = vweird.f32 %v153
    %vm160 = vmor %vm158, %vm159
    %v161 = vsel %vm160, %v153, %v157
    %v162 = vand.u32 2147483647, %v152
    %vm163 = vcmp.eq.f32.partialorder %v162, 8.507059e+37
    %v164 = vand.u32 %v152, 2147483648
    %v165 = vor.u32 1.1754944e-38, %v164
    %v166 = vsel %vm163, %v165, %v161
    %v167 = vmul.f32 1.0, %v166
    %vm168 = vcmask 57344
    %169 = vst.msk [vmem:[#allocation8] sm:$0x1] %vm168, %v167
    // Predicated region
    $region30: #{tpu_custom_call.1} parent=1 // pred_check
      _
    $region31: #{tpu_custom_call.1} parent=1 // pred_check_branch
      %171 = sbr.rel (0) target = $region33
    $region32: #{tpu_custom_call.1} parent=1 // pred_region
      %173 = vsyncadd [#allocation5], 0
      %s175 = sshll.u32 [#allocation8], 4
      %s176 = int_to_ptr.vmem [resolvable:$true] %s175
      %s177 = sshll.u32 %s5, 4
      %s178 = int_to_ptr.hbm [resolvable:$true] %s177
      %180 = dma.vmem_to_hbm [thread:$0]  %s176, 16, %s178, [#allocation5]
    $region33: #{tpu_custom_call.1} parent=1 // pred_fallthru
      _
    // Predicated region
    $region34: #{tpu_custom_call.1} parent=1 // pred_check
      _
    $region35: #{tpu_custom_call.1} parent=1 // pred_check_branch
      %182 = sbr.rel (0) target = $region37
    $region36: #{tpu_custom_call.1} parent=1 // pred_region
      %184 = dma.done [#allocation5], 16
    $region37: #{tpu_custom_call.1} parent=1 // pred_fallthru
      _
    %185 = vsyncpa [#allocation4], 1
    %186 = vsyncpa [#allocation7], 1
    %187 = vsyncpa [#allocation5], 1

</llo_original>
